<compile_context>
chip_gen: v5e
topology: v5e:2x2
jax: 0.10.0
libtpu: 0.0.40
codegen_flags: <defaults>
</compile_context>

<pallas_src>
import jax
import jax.numpy as jnp
from jax.experimental import pallas as pl
from jax.experimental.pallas import tpu as pltpu


# ---------------------------------------------------------------------------
# helpers
# ---------------------------------------------------------------------------
def _round_up(x, m):
    return (x + m - 1) // m * m


def _pick_row_tile(npad, max_tile):
    """Largest multiple-of-8 row tile <= max_tile that divides npad."""
    tm = max(8, min(npad, (max_tile // 8) * 8))
    while npad % tm:
        tm -= 8
    return tm


def _pad_rows(x, npad):
    n = x.shape[0]
    if n == npad:
        return x
    pad = jnp.zeros((npad - n,) + x.shape[1:], x.dtype)
    return jnp.concatenate([x, pad], axis=0)


def _pad_idx(idx, epad):
    idx = idx.astype(jnp.int32)
    e = idx.shape[0]
    if e == epad:
        return idx
    return jnp.concatenate([idx, jnp.zeros((epad - e,), jnp.int32)])


# ---------------------------------------------------------------------------
# Kernel 1: hop-invariant node projections (run once per forward)
#   px  = x @ Wl_x        (edge-MLP contribution of x_dst)
#   fcx = x @ Wfc + bfc   (GNNDiscLayer fc(x), reused every hop)
# ---------------------------------------------------------------------------
def _node_pre_kernel(x_ref, wlx_ref, wfc_ref, bfc_ref, px_ref, fcx_ref):
    x = x_ref[...]
    px_ref[...] = jnp.dot(x, wlx_ref[...], preferred_element_type=jnp.float32)
    fcx_ref[...] = (
        jnp.dot(x, wfc_ref[...], preferred_element_type=jnp.float32) + bfc_ref[...]
    )


def node_precompute(x, wlx, wfc, bfc, tm):
    npad, f = x.shape
    h = wlx.shape[1]
    tiled = lambda c: pl.BlockSpec((tm, c), lambda i: (i, 0))
    res = lambda r, c: pl.BlockSpec((r, c), lambda i: (0, 0))
    return pl.pallas_call(
        _node_pre_kernel,
        out_shape=(jax.ShapeDtypeStruct((npad, h), jnp.float32),
                   jax.ShapeDtypeStruct((npad, h), jnp.float32)),
        grid_spec=pltpu.PrefetchScalarGridSpec(
            num_scalar_prefetch=0, grid=(npad // tm,),
            in_specs=[tiled(f), res(f, h), res(f, h), res(1, h)],
            out_specs=(tiled(h), tiled(h))),
        compiler_params=pltpu.CompilerParams(dimension_semantics=("parallel",)),
    )(x, wlx, wfc, bfc.reshape(1, -1))


# ---------------------------------------------------------------------------
# Kernel 2: per-hop node projections
#   p_src = root @ Wl_r + m @ Wl_m + bl   (edge-MLP contribution of src)
#   rhs   = [ fc(m) | root ]              (fused RHS for the push matmul)
# ---------------------------------------------------------------------------
def _node_hop_kernel(root_ref, m_ref, wlr_ref, wlm_ref, bl_ref, wfc_ref, bfc_ref,
                     psrc_ref, rhs_ref):
    root = root_ref[...]
    m = m_ref[...]
    psrc_ref[...] = (
        jnp.dot(root, wlr_ref[...], preferred_element_type=jnp.float32)
        + jnp.dot(m, wlm_ref[...], preferred_element_type=jnp.float32)
        + bl_ref[...]
    )
    fc_m = jnp.dot(m, wfc_ref[...], preferred_element_type=jnp.float32) + bfc_ref[...]
    rhs_ref[...] = jnp.concatenate([fc_m, root], axis=1)


def node_hop(root, m, wlr, wlm, bl, wfc, bfc, tm):
    npad, h = root.shape
    f = wfc.shape[0]
    tiled = lambda c: pl.BlockSpec((tm, c), lambda i: (i, 0))
    res = lambda r, c: pl.BlockSpec((r, c), lambda i: (0, 0))
    return pl.pallas_call(
        _node_hop_kernel,
        out_shape=(jax.ShapeDtypeStruct((npad, h), jnp.float32),
                   jax.ShapeDtypeStruct((npad, 2 * h), jnp.float32)),
        grid_spec=pltpu.PrefetchScalarGridSpec(
            num_scalar_prefetch=0, grid=(npad // tm,),
            in_specs=[tiled(h), tiled(h), res(h, h), res(h, h), res(1, h),
                      res(f, h), res(1, h)],
            out_specs=(tiled(h), tiled(2 * h))),
        compiler_params=pltpu.CompilerParams(dimension_semantics=("parallel",)),
    )(root, m, wlr, wlm, bl.reshape(1, -1), wfc, bfc.reshape(1, -1))


# ---------------------------------------------------------------------------
# Kernel 3: edge scores (apply_edges + U_s(relu(linear(.)))) — lane-dense out.
# src/dst are scalar-prefetched into SMEM; p_src / p_dst stay resident in
# VMEM and are gathered per edge tile inside the kernel.
# ---------------------------------------------------------------------------
def _edge_score_kernel(src_ref, dst_ref, psrc_ref, pdst_ref, wu_ref, bu_ref,
                       out_ref, hid_ref):
    te = hid_ref.shape[0]
    base = pl.program_id(0) * te

    @pl.loop(0, te)
    def _(e):
        s = src_ref[base + e]
        d = dst_ref[base + e]
        hid_ref[pl.ds(e, 1), :] = psrc_ref[pl.ds(s, 1), :] + pdst_ref[pl.ds(d, 1), :]

    hidden = jnp.maximum(hid_ref[...], 0.0)
    # (1, TE) lane-dense scores straight from the MXU (no [E, 1] column store)
    out_ref[...] = (
        jnp.einsum("oh,eh->oe", wu_ref[...], hidden,
                   preferred_element_type=jnp.float32)
        + bu_ref[...]
    )


def edge_scores(src, dst, p_src, p_dst, wu_row, bu_11, te=128):
    epad = src.shape[0]
    npad, h = p_src.shape
    res = lambda r, c: pl.BlockSpec((r, c), lambda t, s_ref, d_ref: (0, 0))
    return pl.pallas_call(
        _edge_score_kernel,
        out_shape=jax.ShapeDtypeStruct((1, epad), jnp.float32),
        grid_spec=pltpu.PrefetchScalarGridSpec(
            num_scalar_prefetch=2, grid=(epad // te,),
            in_specs=[res(npad, h), res(npad, h), res(1, h), res(1, 1)],
            out_specs=pl.BlockSpec((1, te), lambda t, s_ref, d_ref: (0, t)),
            scratch_shapes=[pltpu.VMEM((te, h), jnp.float32)]),
        compiler_params=pltpu.CompilerParams(dimension_semantics=("parallel",)),
    )(src, dst, p_src, p_dst, wu_row, bu_11)


# ---------------------------------------------------------------------------
# Kernel 4: GNNDiscLayer push/reduce (depth=2, messages fc(m_src)).
# A holds raw in-edge counts; one fused [tm, N] @ [N, 2H] contraction produces
# both the fc(m) message sum and the root sum; mailbox-mean normalization and
# the "has incoming message" mask are derived from A's row sums in-kernel.
# ---------------------------------------------------------------------------
def _push_reduce_kernel(a_ref, rhs_ref, fcx_ref, m_ref, root_ref,
                        m_out_ref, root_out_ref):
    h = m_ref.shape[1]
    a = a_ref[...]
    deg = jnp.sum(a, axis=1, keepdims=True)                               # (tm, 1)
    agg = jnp.dot(a, rhs_ref[...], preferred_element_type=jnp.float32)    # (tm, 2h)
    inv = 1.0 / jnp.maximum(deg, 1.0)
    m_upd = jnp.maximum(fcx_ref[...] + agg[:, :h] * inv, 0.0)
    root_upd = agg[:, h:] * inv
    has_msg = deg > 0.0
    m_out_ref[...] = jnp.where(has_msg, m_upd, m_ref[...])
    root_out_ref[...] = jnp.where(has_msg, root_upd, root_ref[...])


def push_reduce(a, rhs, fcx, m, root, tm):
    npad, h = m.shape
    tiled = lambda c: pl.BlockSpec((tm, c), lambda i: (i, 0))
    res = lambda r, c: pl.BlockSpec((r, c), lambda i: (0, 0))
    return pl.pallas_call(
        _push_reduce_kernel,
        out_shape=(jax.ShapeDtypeStruct((npad, h), jnp.float32),
                   jax.ShapeDtypeStruct((npad, h), jnp.float32)),
        grid_spec=pltpu.PrefetchScalarGridSpec(
            num_scalar_prefetch=0, grid=(npad // tm,),
            in_specs=[pl.BlockSpec((tm, npad), lambda i: (i, 0)),
                      res(npad, 2 * h), tiled(h), tiled(h), tiled(h)],
            out_specs=(tiled(h), tiled(h))),
        compiler_params=pltpu.CompilerParams(
            dimension_semantics=("parallel",),
            vmem_limit_bytes=32 * 1024 * 1024),
    )(a, rhs, fcx, m, root)


# ---------------------------------------------------------------------------
# _SubGDiscriminator.forward
# ---------------------------------------------------------------------------
def subg_discriminator_forward(hop_edges, emb, features, params):
    """hop_edges: list (per block) of (src, dst) int arrays into the node set.
    emb: [N, H] 'root' embeddings, features: [N, F] node features.
    Returns per-hop edge scores [E_i, 1] in reversed hop order (matching the
    PyTorch loop `for i in range(len(blocks[2]))[::-1]`)."""
    wl, bl, wu, bu, wfc, bfc = params
    n, f = features.shape
    h = emb.shape[1]

    # split of the fused edge-MLP weight: input is cat([root_src, m_src, x_dst])
    wl_r, wl_m, wl_x = wl[:h], wl[h:2 * h], wl[2 * h:]
    wu_row = wu.reshape(1, -1)
    bu_11 = bu.reshape(1, 1)

    npad = _round_up(n, 128) if n >= 128 else _round_up(n, 8)
    tm_node = _pick_row_tile(npad, 256)
    # keep one (tm, N) f32 A tile (double-buffered) well under the VMEM budget
    tm_a = _pick_row_tile(npad, max(8, (4 * 1024 * 1024) // (npad * 4)))
    te = 128

    root = _pad_rows(emb.astype(jnp.float32), npad)
    x = _pad_rows(features.astype(jnp.float32), npad)
    m = jnp.zeros_like(root)                     # small_g.ndata['m'] = zeros

    # hop-invariant projections (x never changes across hops)
    px, fcx = node_precompute(x, wl_x, wfc, bfc, tm_node)

    edge_embs = []
    hops = list(reversed(hop_edges))
    for hop_idx, (src, dst) in enumerate(hops):
        e = src.shape[0]
        epad = _round_up(e, te)
        src_p = _pad_idx(src, epad)
        dst_p = _pad_idx(dst, epad)

        # per-hop node projections (pre-push state, as in apply_edges)
        p_src, rhs = node_hop(root, m, wl_r, wl_m, bl, wfc, bfc, tm_node)

        # apply_edges + U_s(relu(linear(.))): in-kernel gather, lane-dense row
        scores = edge_scores(src_p, dst_p, p_src, px, wu_row, bu_11, te)
        edge_embs.append(scores[0, :e].reshape(e, 1))

        if hop_idx + 1 == len(hops):
            break  # final push only mutates internal state; unobservable

        # g.push(vs, msg, reduce): dense adjacency of raw in-edge counts
        # (parallel edges counted individually, as DGL does); mailbox-mean
        # normalization happens inside the kernel.
        # TODO(synk): g.edge_subgraph / find_edges / out_edges have no Pallas
        # equivalent (edge lists precomputed host-side); for large graphs the
        # dense [N, N] adjacency should be built tile-by-tile in-kernel from
        # the edge lists instead of this XLA scatter-add.
        a = jnp.zeros((npad, npad), jnp.float32).at[dst, src].add(1.0)
        m, root = push_reduce(a, rhs, fcx, m, root, tm_a)

    return edge_embs


# ---------------------------------------------------------------------------
# demo + self-check
# ---------------------------------------------------------------------------
if __name__ == "__main__":
    key = jax.random.PRNGKey(0)

    # in_feats must equal n_hidden for GNNDiscLayer.msg(depth=2) to typecheck
    # (fc: Linear(in_feats, n_hidden) applied to 'm' which has n_hidden dims).
    N, F, H = 16, 16, 16
    n_layers = 2  # number of blocks / hops

    keys = jax.random.split(key, 12)
    features = jax.random.normal(keys[0], (N, F), jnp.float32)
    emb = jax.random.normal(keys[1], (N, H), jnp.float32)

    # Parameter shapes from __init__:
    #   self.linear = Linear(in_feats + 2*n_hidden, n_hidden)
    #   self.U_s    = Linear(n_hidden, 1)
    #   GNNDiscLayer.fc = Linear(in_feats, n_hidden)
    wl = 0.1 * jax.random.normal(keys[2], (F + 2 * H, H), jnp.float32)
    bl = 0.1 * jax.random.normal(keys[3], (H,), jnp.float32)
    wu = 0.1 * jax.random.normal(keys[4], (H, 1), jnp.float32)
    bu = 0.1 * jax.random.normal(keys[5], (1,), jnp.float32)
    wfc = 0.1 * jax.random.normal(keys[6], (F, H), jnp.float32)
    bfc = 0.1 * jax.random.normal(keys[7], (H,), jnp.float32)
    params = (wl, bl, wu, bu, wfc, bfc)

    # Synthetic per-hop edge lists standing in for the DGL reversed subgraph.
    hop_edges = []
    edge_counts = (24, 16)
    kidx = 8
    for E in edge_counts[:n_layers]:
        src = jax.random.randint(keys[kidx], (E,), 0, N)
        dst = jax.random.randint(keys[kidx + 1], (E,), 0, N)
        hop_edges.append((src, dst))
        kidx += 2

    edge_embs = subg_discriminator_forward(hop_edges, emb, features, params)
    for t in edge_embs:
        jax.block_until_ready(t)

    assert len(edge_embs) == n_layers
    assert edge_embs[0].shape == (edge_counts[1], 1)  # reversed hop order
    assert edge_embs[1].shape == (edge_counts[0], 1)

    # pure-JAX reference of the same semantics
    def _ref_forward(hop_edges, emb, features, params):
        wl, bl, wu, bu, wfc, bfc = params
        n = features.shape[0]
        root, xf = emb, features
        mm = jnp.zeros_like(emb)
        outs = []
        for (src, dst) in reversed(hop_edges):
            hcat = jnp.concatenate([root[src], mm[src], xf[dst]], axis=1)
            outs.append(jnp.maximum(hcat @ wl + bl, 0.0) @ wu + bu)
            a = jnp.zeros((n, n), jnp.float32).at[dst, src].add(1.0)
            deg = a.sum(axis=1, keepdims=True)
            an = a / jnp.maximum(deg, 1.0)
            mask = deg > 0.0
            m_upd = jnp.maximum(xf @ wfc + bfc + an @ (mm @ wfc + bfc), 0.0)
            r_upd = an @ root
            mm = jnp.where(mask, m_upd, mm)
            root = jnp.where(mask, r_upd, root)
        return outs

    with jax.default_matmul_precision("highest"):
        refs = _ref_forward(hop_edges, emb, features, params)
    for got, ref in zip(edge_embs, refs):
        assert bool(jnp.allclose(got, ref, atol=2e-2, rtol=2e-2)), (
            float(jnp.max(jnp.abs(got - ref))))

    print("KERNEL_OK")
</pallas_src>

<mosaic_0001>
module attributes {stable_mosaic.version = 11 : i64} {
  func.func @_node_pre_kernel(%arg0: i32, %arg1: memref<16x16xf32, #tpu.memory_space<vmem>>, %arg2: memref<16x16xf32, #tpu.memory_space<vmem>>, %arg3: memref<16x16xf32, #tpu.memory_space<vmem>>, %arg4: memref<1x16xf32, #tpu.memory_space<vmem>>, %arg5: memref<16x16xf32, #tpu.memory_space<vmem>>, %arg6: memref<16x16xf32, #tpu.memory_space<vmem>>) attributes {dimension_semantics = [#tpu.dimension_semantics<parallel>], iteration_bounds = array<i64: 1>, scalar_prefetch = 0 : i64, scratch_operands = 0 : i64, tpu.core_type = #tpu.core_type<tc>, window_params = [{transform_indices = @transform_0, window_bounds = array<i64: 16, 16>}, {pipeline_mode = #tpu.pipeline_mode<synchronous>, transform_indices = @transform_1, window_bounds = array<i64: 16, 16>}, {pipeline_mode = #tpu.pipeline_mode<synchronous>, transform_indices = @transform_2, window_bounds = array<i64: 16, 16>}, {pipeline_mode = #tpu.pipeline_mode<synchronous>, transform_indices = @transform_3, window_bounds = array<i64: 1, 16>}, {transform_indices = @transform_4, window_bounds = array<i64: 16, 16>}, {transform_indices = @transform_5, window_bounds = array<i64: 16, 16>}]} {
    %c0 = arith.constant 0 : index
    %c0_0 = arith.constant 0 : index
    %0 = vector.load %arg1[%c0, %c0_0] : memref<16x16xf32, #tpu.memory_space<vmem>>, vector<16x16xf32>
    %c0_1 = arith.constant 0 : index
    %c0_2 = arith.constant 0 : index
    %1 = vector.load %arg2[%c0_1, %c0_2] : memref<16x16xf32, #tpu.memory_space<vmem>>, vector<16x16xf32>
    %cst = arith.constant dense<0.000000e+00> : vector<16x16xf32>
    %2 = tpu.matmul %0, %1, %cst {dimension_numbers = #tpu.dot_dimension_numbers<[1], [0], [0], [1], [0, 0, 1, 1], [], []>} : vector<16x16xf32>, vector<16x16xf32>, vector<16x16xf32> -> vector<16x16xf32>
    %c0_3 = arith.constant 0 : index
    %c0_4 = arith.constant 0 : index
    %3 = vector.load %arg5[%c0_3, %c0_4] : memref<16x16xf32, #tpu.memory_space<vmem>>, vector<16x16xf32>
    tpu.vector_store %arg5[%c0_3, %c0_4], %2 {strides = array<i32>} : memref<16x16xf32, #tpu.memory_space<vmem>>, vector<16x16xf32>,
    %c0_5 = arith.constant 0 : index
    %c0_6 = arith.constant 0 : index
    %4 = vector.load %arg3[%c0_5, %c0_6] : memref<16x16xf32, #tpu.memory_space<vmem>>, vector<16x16xf32>
    %cst_7 = arith.constant dense<0.000000e+00> : vector<16x16xf32>
    %5 = tpu.matmul %0, %4, %cst_7 {dimension_numbers = #tpu.dot_dimension_numbers<[1], [0], [0], [1], [0, 0, 1, 1], [], []>} : vector<16x16xf32>, vector<16x16xf32>, vector<16x16xf32> -> vector<16x16xf32>
    %c0_8 = arith.constant 0 : index
    %c0_9 = arith.constant 0 : index
    %6 = vector.load %arg4[%c0_8, %c0_9] : memref<1x16xf32, #tpu.memory_space<vmem>>, vector<1x16xf32>
    %7 = vector.broadcast %6 : vector<1x16xf32> to vector<16x16xf32>
    %8 = arith.addf %5, %7 : vector<16x16xf32>
    %c0_10 = arith.constant 0 : index
    %c0_11 = arith.constant 0 : index
    %9 = vector.load %arg6[%c0_10, %c0_11] : memref<16x16xf32, #tpu.memory_space<vmem>>, vector<16x16xf32>
    tpu.vector_store %arg6[%c0_10, %c0_11], %8 {strides = array<i32>} : memref<16x16xf32, #tpu.memory_space<vmem>>, vector<16x16xf32>,
    return
  }
  func.func @transform_0(%arg0: i32) -> (i32, i32) {
    %c0_i32 = arith.constant 0 : i32
    %c0_i32_0 = arith.constant 0 : i32
    return %arg0, %c0_i32 : i32, i32
  }
  func.func @transform_1(%arg0: i32) -> (i32, i32) {
    %c0_i32 = arith.constant 0 : i32
    %c0_i32_0 = arith.constant 0 : i32
    %c0_i32_1 = arith.constant 0 : i32
    return %c0_i32, %c0_i32_0 : i32, i32
  }
  func.func @transform_2(%arg0: i32) -> (i32, i32) {
    %c0_i32 = arith.constant 0 : i32
    %c0_i32_0 = arith.constant 0 : i32
    %c0_i32_1 = arith.constant 0 : i32
    return %c0_i32, %c0_i32_0 : i32, i32
  }
  func.func @transform_3(%arg0: i32) -> (i32, i32) {
    %c0_i32 = arith.constant 0 : i32
    %c0_i32_0 = arith.constant 0 : i32
    %c0_i32_1 = arith.constant 0 : i32
    return %c0_i32, %c0_i32_0 : i32, i32
  }
  func.func @transform_4(%arg0: i32) -> (i32, i32) {
    %c0_i32 = arith.constant 0 : i32
    %c0_i32_0 = arith.constant 0 : i32
    return %arg0, %c0_i32 : i32, i32
  }
  func.func @transform_5(%arg0: i32) -> (i32, i32) {
    %c0_i32 = arith.constant 0 : i32
    %c0_i32_0 = arith.constant 0 : i32
    return %arg0, %c0_i32 : i32, i32
  }
}

</mosaic_0001>

<llo_original>
// kernel: tpu_custom_call.1
$region0: #{tpu_custom_call.1}
  #allocation0 [shape = 'u32[]', space=smem, size = 0x4, offset = 0x4, fixed_abs, tag = 'smem constant byte address 0x4 - core index']
  #allocation1 [shape = 'u32[72,128]{1,0:T(1,128)}', space=vmem, size = 0x9000, scoped, tag = 'internal scratch']
  %s0 = inlined_call_operand.hbm [shape: f32[16,16], index: 0, kind: input, shape index: {}]
  %s1 = inlined_call_operand.hbm [shape: f32[16,16], index: 1, kind: input, shape index: {}]
  %s2 = inlined_call_operand.hbm [shape: f32[16,16], index: 2, kind: input, shape index: {}]
  %s3 = inlined_call_operand.vmem [shape: f32[1,16], index: 3, kind: input, shape index: {}]
  %s4 = inlined_call_operand.hbm [shape: f32[16,16], index: 4, kind: output, shape index: {0}]
  %s5 = inlined_call_operand.hbm [shape: f32[16,16], index: 5, kind: output, shape index: {1}]
  %6 = xla_tuple %s4, %s5
  %s7 = sld [smem:[#allocation0]]
  $region46: #{tpu_custom_call.1} parent=0
    _
  %s9 = ssub.s32 1, %s7
  %s10 = scalar_select 0, %s9, %s7
  $region1: #{tpu_custom_call.1} parent=0
    #allocation2 [shape = 'u8[8192]{0}', space=vmem, size = 0x2000, scoped, tag = 'input window, operand 0, single buffered']
    #allocation3 [shape = 's32[1]{0}', space=sflag, size = 0x4, scoped, tag = 'scoped memory for tpu_custom_call.1']
    #allocation4 [shape = 's32[1]{0}', space=sflag, size = 0x4, scoped, tag = 'scoped memory for tpu_custom_call.1']
    #allocation5 [shape = 'u8[8192]{0}', space=vmem, size = 0x2000, scoped, tag = 'input window, operand 1, single buffered']
    #allocation6 [shape = 's32[1]{0}', space=sflag, size = 0x4, scoped, tag = 'scoped memory for tpu_custom_call.1']
    #allocation7 [shape = 'u8[8192]{0}', space=vmem, size = 0x2000, scoped, tag = 'input window, operand 2, single buffered']
    #allocation8 [shape = 'u8[8192]{0}', space=vmem, size = 0x2000, scoped, tag = 'output window, operand 0, single buffered']
    #allocation9 [shape = 'u8[8192]{0}', space=vmem, size = 0x2000, scoped, tag = 'output window, operand 1, single buffered']
    #allocation10 [shape = 's32[1]{0}', space=sflag, size = 0x4, scoped, tag = 'scoped memory for tpu_custom_call.1']
    %11 = vsyncpa [#allocation3], 0
    %12 = vsyncpa [#allocation6], 0
    %13 = vsyncpa [#allocation4], 0
    %14 = vsyncpa [#allocation10], 0
    // Predicated region
    $region2: #{tpu_custom_call.1} parent=1 // pred_check
      _
    $region3: #{tpu_custom_call.1} parent=1 // pred_check_branch
      %16 = sbr.rel (0) target = $region5
    $region4: #{tpu_custom_call.1} parent=1 // pred_region
      %18 = vsyncadd [#allocation3], 0
      %s19 = sshll.u32 %s0, 4
      %s20 = int_to_ptr.hbm [resolvable:$true] %s19
      %s21 = sshll.u32 [#allocation2], 4
      %s22 = int_to_ptr.vmem [resolvable:$true] %s21
      %27 = dma.hbm_to_vmem [thread:$0]  %s20, 256, %s22, [#allocation3], 128, 128, 8
    $region5: #{tpu_custom_call.1} parent=1 // pred_fallthru
      _
    // Predicated region
    $region6: #{tpu_custom_call.1} parent=1 // pred_check
      _
    $region7: #{tpu_custom_call.1} parent=1 // pred_check_branch
      %29 = sbr.rel (0) target = $region9
    $region8: #{tpu_custom_call.1} parent=1 // pred_region
      %31 = vsyncadd [#allocation6], 0
      %s32 = sshll.u32 %s1, 4
      %s33 = int_to_ptr.hbm [resolvable:$true] %s32
      %s34 = sshll.u32 [#allocation5], 4
      %s35 = int_to_ptr.vmem [resolvable:$true] %s34
      %40 = dma.hbm_to_vmem [thread:$0]  %s33, 256, %s35, [#allocation6], 128, 128, 8
    $region9: #{tpu_custom_call.1} parent=1 // pred_fallthru
      _
    // Predicated region
    $region10: #{tpu_custom_call.1} parent=1 // pred_check
      _
    $region11: #{tpu_custom_call.1} parent=1 // pred_check_branch
      %42 = sbr.rel (0) target = $region13
    $region12: #{tpu_custom_call.1} parent=1 // pred_region
      %44 = vsyncadd [#allocation6], 0
      %s45 = sshll.u32 %s2, 4
      %s46 = int_to_ptr.hbm [resolvable:$true] %s45
      %s47 = sshll.u32 [#allocation7], 4
      %s48 = int_to_ptr.vmem [resolvable:$true] %s47
      %53 = dma.hbm_to_vmem [thread:$0]  %s46, 256, %s48, [#allocation6], 128, 128, 8
    $region13: #{tpu_custom_call.1} parent=1 // pred_fallthru
      _
    // Predicated region
    $region14: #{tpu_custom_call.1} parent=1 // pred_check
      _
    $region15: #{tpu_custom_call.1} parent=1 // pred_check_branch
      %55 = sbr.rel (0) target = $region17
    $region16: #{tpu_custom_call.1} parent=1 // pred_region
      _
    $region17: #{tpu_custom_call.1} parent=1 // pred_fallthru
      _
    // Predicated region
    $region18: #{tpu_custom_call.1} parent=1 // pred_check
      _
    $region19: #{tpu_custom_call.1} parent=1 // pred_check_branch
      %57 = sbr.rel (0) target = $region21
    $region20: #{tpu_custom_call.1} parent=1 // pred_region
      %59 = dma.done [#allocation3], 256
    $region21: #{tpu_custom_call.1} parent=1 // pred_fallthru
      _
    // Predicated region
    $region22: #{tpu_custom_call.1} parent=1 // pred_check
      _
    $region23: #{tpu_custom_call.1} parent=1 // pred_check_branch
      %61 = sbr.rel (0) target = $region25
    $region24: #{tpu_custom_call.1} parent=1 // pred_region
      %63 = dma.done [#allocation6], 256
    $region25: #{tpu_custom_call.1} parent=1 // pred_fallthru
      _
    // Predicated region
    $region26: #{tpu_custom_call.1} parent=1 // pred_check
      _
    $region27: #{tpu_custom_call.1} parent=1 // pred_check_branch
      %65 = sbr.rel (0) target = $region29
    $region28: #{tpu_custom_call.1} parent=1 // pred_region
      %67 = dma.done [#allocation6], 256
    $region29: #{tpu_custom_call.1} parent=1 // pred_fallthru
      _
    %v68 = vld [vmem:[#allocation2] sm:$0xff]
    %v69 = vld [vmem:[#allocation2 + $0x8] sm:$0xff]
    %v70 = vld [vmem:[#allocation5] sm:$0xff]
    %v71 = vld [vmem:[#allocation5 + $0x8] sm:$0xff]
    %vm72 = vcmask 130048
    %v74 = vsel %vm72, %v68, 0
    %v77 = vsel %vm72, %v69, 0
    %79 = vmatpush.msra.mxu0 0.0
    %80 = vmatpush.msra.mxu0 0.0
    %81 = vmatpush.msra.mxu0 0.0
    %82 = vmatpush.msra.mxu0 0.0
    %83 = vmatpush.msra.mxu0 0.0
    %84 = vmatpush.msra.mxu0 0.0
    %85 = vmatpush.msra.mxu0 0.0
    %86 = vmatpush.msra.mxu0 0.0
    %87 = vmatpush.msra.mxu0 0.0
    %88 = vmatpush.msra.mxu0 0.0
    %89 = vmatpush.msra.mxu0 0.0
    %90 = vmatpush.msra.mxu0 0.0
    %91 = vmatpush.msra.mxu0 0.0
    %92 = vmatpush.msra.mxu0 0.0
    %93 = vmatpush.msra.mxu0 %v71
    %94 = vmatpush.msra.mxu0 %v70
    %95 = vmatmul.f32.gmra.mxu0 %v74
    %v96 = vpop.f32.mrf.mxu0
    %v97 = vadd.f32 0.0, %v96
    %98 = vmatmul.f32.gmra.mxu0 %v77
    %v99 = vpop.f32.mrf.mxu0
    %v100 = vadd.f32 0.0, %v99
    %101 = vdwg.mxu0
    %102 = vst.msk [vmem:[#allocation8] sm:$0xff] %vm72, %v97
    %103 = vst.msk [vmem:[#allocation8 + $0x8] sm:$0xff] %vm72, %v100
    %v104 = vld [vmem:[#allocation7] sm:$0xff]
    %v105 = vld [vmem:[#allocation7 + $0x8] sm:$0xff]
    %v106 = vld [vmem:[%s3] sm:$0x1]
    %v108 = vperm.slane %v106, 0
    %110 = vmatpush.msra.mxu0 0.0
    %111 = vmatpush.msra.mxu0 0.0
    %112 = vmatpush.msra.mxu0 0.0
    %113 = vmatpush.msra.mxu0 0.0
    %114 = vmatpush.msra.mxu0 0.0
    %115 = vmatpush.msra.mxu0 0.0
    %116 = vmatpush.msra.mxu0 0.0
    %117 = vmatpush.msra.mxu0 0.0
    %118 = vmatpush.msra.mxu0 0.0
    %119 = vmatpush.msra.mxu0 0.0
    %120 = vmatpush.msra.mxu0 0.0
    %121 = vmatpush.msra.mxu0 0.0
    %122 = vmatpush.msra.mxu0 0.0
    %123 = vmatpush.msra.mxu0 0.0
    %124 = vmatpush.msra.mxu0 %v105
    %125 = vmatpush.msra.mxu0 %v104
    %126 = vmatmul.f32.gmra.mxu0 %v74
    %v127 = vpop.f32.mrf.mxu0
    %v128 = vadd.f32 %v108, %v127
    %129 = vmatmul.f32.gmra.mxu0 %v77
    %v130 = vpop.f32.mrf.mxu0
    %v131 = vadd.f32 %v108, %v130
    %132 = vdwg.mxu0
    %133 = vst.msk [vmem:[#allocation9] sm:$0xff] %vm72, %v128
    %134 = vst.msk [vmem:[#allocation9 + $0x8] sm:$0xff] %vm72, %v131
    // Predicated region
    $region30: #{tpu_custom_call.1} parent=1 // pred_check
      _
    $region31: #{tpu_custom_call.1} parent=1 // pred_check_branch
      %136 = sbr.rel (0) target = $region33
    $region32: #{tpu_custom_call.1} parent=1 // pred_region
      %138 = vsyncadd [#allocation4], 0
      %s139 = sshll.u32 [#allocation8], 4
      %s140 = int_to_ptr.vmem [resolvable:$true] %s139
      %s141 = sshll.u32 %s4, 4
      %s142 = int_to_ptr.hbm [resolvable:$true] %s141
      %147 = dma.vmem_to_hbm [thread:$0]  %s140, 256, %s142, [#allocation4], 128, 128, 8
    $region33: #{tpu_custom_call.1} parent=1 // pred_fallthru
      _
    // Predicated region
    $region34: #{tpu_custom_call.1} parent=1 // pred_check
      _
    $region35: #{tpu_custom_call.1} parent=1 // pred_check_branch
      %149 = sbr.rel (0) target = $region37
    $region36: #{tpu_custom_call.1} parent=1 // pred_region
      %151 = vsyncadd [#allocation10], 0
      %s152 = sshll.u32 [#allocation9], 4
      %s153 = int_to_ptr.vmem [resolvable:$true] %s152
      %s154 = sshll.u32 %s5, 4
      %s155 = int_to_ptr.hbm [resolvable:$true] %s154
      %160 = dma.vmem_to_hbm [thread:$0]  %s153, 256, %s155, [#allocation10], 128, 128, 8
    $region37: #{tpu_custom_call.1} parent=1 // pred_fallthru
      _
    // Predicated region
    $region38: #{tpu_custom_call.1} parent=1 // pred_check
      _
    $region39: #{tpu_custom_call.1} parent=1 // pred_check_branch
      %162 = sbr.rel (0) target = $region41
    $region40: #{tpu_custom_call.1} parent=1 // pred_region
      %164 = dma.done [#allocation4], 256
    $region41: #{tpu_custom_call.1} parent=1 // pred_fallthru
      _
    // Predicated region
    $region42: #{tpu_custom_call.1} parent=1 // pred_check
      _
    $region43: #{tpu_custom_call.1} parent=1 // pred_check_branch
      %166 = sbr.rel (0) target = $region45
    $region44: #{tpu_custom_call.1} parent=1 // pred_region
      %168 = dma.done [#allocation10], 256
    $region45: #{tpu_custom_call.1} parent=1 // pred_fallthru
      _
    %169 = vsyncpa [#allocation3], 1
    %170 = vsyncpa [#allocation6], 1
    %171 = vsyncpa [#allocation4], 1
    %172 = vsyncpa [#allocation10], 1

</llo_original>
